<compile_context>
chip_gen: v6e
topology: v6e:2x2x1
jax: 0.10.0
libtpu: 0.0.40
codegen_flags: <defaults>
</compile_context>

<pallas_src>
import math

import jax
import jax.numpy as jnp
from jax.experimental import pallas as pl
from jax.experimental.pallas import tpu as pltpu


def _round_up(x, m):
    return ((x + m - 1) // m) * m


def _q_mlp_kernel(obs_ref, act_ref, w1o_ref, w1a_ref, b1_ref,
                  w2_ref, b2_ref, w3_ref, b3_ref, o_ref):
    # In-kernel f32 -> bf16 cast on the VMEM tile (hidden under the K=1024 dot).
    obs_bf = obs_ref[...].astype(jnp.bfloat16)
    act_bf = act_ref[...].astype(jnp.bfloat16)

    # ----- Layer 1: split-K Linear + ReLU -----------------------------------
    # obs path: (TB, 1024) @ (1024, 256) -- K is 128-aligned, bf16 on the MXU.
    h1 = jnp.dot(obs_bf, w1o_ref[...], preferred_element_type=jnp.float32)
    # act path: (TB, act_dim) @ (act_dim, 256) -- tiny, essentially free.
    h1 = h1 + jnp.dot(act_bf, w1a_ref[...], preferred_element_type=jnp.float32)
    h1 = jnp.maximum(h1 + b1_ref[...], 0.0)            # f32 bias + ReLU (VPU)

    # ----- Layer 2: Linear + ReLU --------------------------------------------
    h2 = jnp.dot(h1.astype(w2_ref.dtype), w2_ref[...],
                 preferred_element_type=jnp.float32)
    h2 = jnp.maximum(h2 + b2_ref[...], 0.0)

    # ----- Layer 3: N=1 matmul as a VPU multiply + lane reduction ------------
    q = jnp.sum(h2 * w3_ref[...], axis=-1, keepdims=True) + b3_ref[...]
    o_ref[...] = q.astype(o_ref.dtype)


def q_function_forward(obs, act, params, *, tile_b=512):
    """obs: (B, C, H, W) float (NCHW, as PyTorch). act: (B, act_dim) float.

    Returns q-values of shape (B,) float32.
    """
    B = obs.shape[0]
    obs_flat = obs.reshape(B, -1)                       # torch.flatten(obs, 1)
    w1o, w1a, b1, w2, b2, w3, b3 = params
    d_obs, h1 = w1o.shape
    act_dim = w1a.shape[0]
    h2 = w2.shape[1]
    assert obs_flat.shape[1] == d_obs and act.shape[1] == act_dim

    # Batch tile: multiple of 8 sublanes, capped at tile_b, and sized so the
    # grid has >= 2 iterations when B allows (keeps both v7x TCs busy). No
    # explicit batch padding -- Pallas handles the partial last block.
    tb = max(8, min(tile_b, _round_up(pl.cdiv(B, 2), 8)))
    n_tiles = pl.cdiv(B, tb)

    def weight_spec(shape):
        # Same block index every grid step -> weight stays VMEM-resident.
        return pl.BlockSpec(shape, lambda i: (0, 0))

    flops = 2 * n_tiles * tb * (d_obs * h1 + act_dim * h1 + h1 * h2 + h2)
    bytes_accessed = (
        obs_flat.size * obs_flat.dtype.itemsize          # f32 obs (on the wire)
        + act.size * act.dtype.itemsize                  # f32 act
        + sum(w.size * w.dtype.itemsize
              for w in (w1o, w1a, b1, w2, b2, w3, b3))   # bf16 weights, f32 biases
        + B * 4)                                         # f32 output

    q2d = pl.pallas_call(
        _q_mlp_kernel,
        out_shape=jax.ShapeDtypeStruct((B, 1), jnp.float32),
        grid=(n_tiles,),
        in_specs=[
            pl.BlockSpec((tb, d_obs), lambda i: (i, 0)),     # obs batch tile (f32)
            pl.BlockSpec((tb, act_dim), lambda i: (i, 0)),   # act batch tile (f32)
            weight_spec((d_obs, h1)),                        # W1[:obs_dim] (bf16)
            weight_spec((act_dim, h1)),                      # W1[obs_dim:] (bf16)
            weight_spec((1, h1)),                            # b1 (f32)
            weight_spec((h1, h2)),                           # W2 (bf16)
            weight_spec((1, h2)),                            # b2 (f32)
            weight_spec((1, h2)),                            # W3 as row (f32)
            weight_spec((1, 1)),                             # b3 (f32)
        ],
        out_specs=pl.BlockSpec((tb, 1), lambda i: (i, 0)),
        compiler_params=pltpu.CompilerParams(
            dimension_semantics=("parallel",)),
        cost_estimate=pl.CostEstimate(
            flops=flops, transcendentals=0, bytes_accessed=bytes_accessed),
    )(obs_flat, act, w1o, w1a, b1, w2, b2, w3, b3)

    # torch.squeeze(q, -1)
    return q2d[:, 0]


def init_params(key, obs_dim, act_dim, hidden_sizes=(256, 256)):
    """PyTorch nn.Linear-style init: U(-1/sqrt(fan_in), 1/sqrt(fan_in)).

    W1 (fan_in = obs_dim + act_dim) is split row-wise into (obs_dim, H1) and
    (act_dim, H1) so the kernel keeps the big matmul's K dim 128-aligned.
    MXU-facing weights are bf16; biases and the final (1, H2) row stay f32.
    """
    h1, h2 = hidden_sizes
    in_dim = obs_dim + act_dim
    _, k1w, k1b, k2w, k2b, k3w, k3b = jax.random.split(key, 7)

    bnd1 = 1.0 / math.sqrt(in_dim)
    w1 = jax.random.uniform(k1w, (in_dim, h1), jnp.float32, -bnd1, bnd1)
    b1 = jax.random.uniform(k1b, (1, h1), jnp.float32, -bnd1, bnd1)
    w1o = w1[:obs_dim].astype(jnp.bfloat16)
    w1a = w1[obs_dim:].astype(jnp.bfloat16)

    bnd2 = 1.0 / math.sqrt(h1)
    w2 = jax.random.uniform(k2w, (h1, h2), jnp.float32, -bnd2, bnd2).astype(jnp.bfloat16)
    b2 = jax.random.uniform(k2b, (1, h2), jnp.float32, -bnd2, bnd2)

    bnd3 = 1.0 / math.sqrt(h2)
    w3 = jax.random.uniform(k3w, (1, h2), jnp.float32, -bnd3, bnd3)  # row form
    b3 = jax.random.uniform(k3b, (1, 1), jnp.float32, -bnd3, bnd3)

    return (w1o, w1a, b1, w2, b2, w3, b3)


if __name__ == "__main__":
    key = jax.random.PRNGKey(0)

    # Small, module-consistent shapes: obs is an image-like Box (NCHW), act flat.
    B, C, H, W = 2, 4, 16, 16
    act_dim = 8
    obs_dim = C * H * W              # prod(obs_space.shape) = 1024

    k_obs, k_act, k_par = jax.random.split(key, 3)
    obs = jax.random.normal(k_obs, (B, C, H, W), jnp.float32)
    act = jax.random.normal(k_act, (B, act_dim), jnp.float32)
    params = init_params(k_par, obs_dim, act_dim, hidden_sizes=(256, 256))

    q = q_function_forward(obs, act, params)
    jax.block_until_ready(q)

    # Reference: identical math in plain JAX (bf16 dot inputs, f32 accumulation).
    w1o, w1a, b1, w2, b2, w3, b3 = params
    xo = obs.reshape(B, -1).astype(jnp.bfloat16)
    xa = act.astype(jnp.bfloat16)
    r1 = (jnp.dot(xo, w1o, preferred_element_type=jnp.float32)
          + jnp.dot(xa, w1a, preferred_element_type=jnp.float32) + b1)
    r1 = jnp.maximum(r1, 0.0)
    r2 = jnp.dot(r1.astype(jnp.bfloat16), w2, preferred_element_type=jnp.float32) + b2
    r2 = jnp.maximum(r2, 0.0)
    ref = jnp.sum(r2 * w3, axis=-1) + b3[0, 0]

    assert q.shape == (B,), q.shape
    assert jnp.allclose(q, ref, atol=1e-3, rtol=1e-3), (q, ref)

    print("KERNEL_OK")
</pallas_src>

<mosaic_0001>
module attributes {stable_mosaic.version = 11 : i64} {
  func.func @_q_mlp_kernel(%arg0: i32, %arg1: memref<8x1024xf32, #tpu.memory_space<vmem>>, %arg2: memref<8x8xf32, #tpu.memory_space<vmem>>, %arg3: memref<1024x256xbf16, #tpu.memory_space<vmem>>, %arg4: memref<8x256xbf16, #tpu.memory_space<vmem>>, %arg5: memref<1x256xf32, #tpu.memory_space<vmem>>, %arg6: memref<256x256xbf16, #tpu.memory_space<vmem>>, %arg7: memref<1x256xf32, #tpu.memory_space<vmem>>, %arg8: memref<1x256xf32, #tpu.memory_space<vmem>>, %arg9: memref<1x1xf32, #tpu.memory_space<vmem>>, %arg10: memref<8x1xf32, #tpu.memory_space<vmem>>) attributes {dimension_semantics = [#tpu.dimension_semantics<parallel>], iteration_bounds = array<i64: 1>, scalar_prefetch = 0 : i64, scratch_operands = 0 : i64, tpu.core_type = #tpu.core_type<tc>, window_params = [{transform_indices = @transform_0, window_bounds = array<i64: 8, 1024>}, {transform_indices = @transform_1, window_bounds = array<i64: 8, 8>}, {pipeline_mode = #tpu.pipeline_mode<synchronous>, transform_indices = @transform_2, window_bounds = array<i64: 1024, 256>}, {pipeline_mode = #tpu.pipeline_mode<synchronous>, transform_indices = @transform_3, window_bounds = array<i64: 8, 256>}, {pipeline_mode = #tpu.pipeline_mode<synchronous>, transform_indices = @transform_4, window_bounds = array<i64: 1, 256>}, {pipeline_mode = #tpu.pipeline_mode<synchronous>, transform_indices = @transform_5, window_bounds = array<i64: 256, 256>}, {pipeline_mode = #tpu.pipeline_mode<synchronous>, transform_indices = @transform_6, window_bounds = array<i64: 1, 256>}, {pipeline_mode = #tpu.pipeline_mode<synchronous>, transform_indices = @transform_7, window_bounds = array<i64: 1, 256>}, {pipeline_mode = #tpu.pipeline_mode<synchronous>, transform_indices = @transform_8, window_bounds = array<i64: 1, 1>}, {transform_indices = @transform_9, window_bounds = array<i64: 8, 1>}]} {
    %c0 = arith.constant 0 : index
    %c0_0 = arith.constant 0 : index
    %0 = vector.load %arg1[%c0, %c0_0] : memref<8x1024xf32, #tpu.memory_space<vmem>>, vector<8x1024xf32>
    %1 = arith.truncf %0 : vector<8x1024xf32> to vector<8x1024xbf16>
    %c0_1 = arith.constant 0 : index
    %c0_2 = arith.constant 0 : index
    %2 = vector.load %arg2[%c0_1, %c0_2] : memref<8x8xf32, #tpu.memory_space<vmem>>, vector<8x8xf32>
    %3 = arith.truncf %2 : vector<8x8xf32> to vector<8x8xbf16>
    %c0_3 = arith.constant 0 : index
    %c0_4 = arith.constant 0 : index
    %4 = vector.load %arg3[%c0_3, %c0_4] : memref<1024x256xbf16, #tpu.memory_space<vmem>>, vector<1024x256xbf16>
    %cst = arith.constant dense<0.000000e+00> : vector<8x256xf32>
    %5 = tpu.matmul %1, %4, %cst {dimension_numbers = #tpu.dot_dimension_numbers<[1], [0], [0], [1], [0, 0, 1, 1], [], []>} : vector<8x1024xbf16>, vector<1024x256xbf16>, vector<8x256xf32> -> vector<8x256xf32>
    %c0_5 = arith.constant 0 : index
    %c0_6 = arith.constant 0 : index
    %6 = vector.load %arg4[%c0_5, %c0_6] : memref<8x256xbf16, #tpu.memory_space<vmem>>, vector<8x256xbf16>
    %cst_7 = arith.constant dense<0.000000e+00> : vector<8x256xf32>
    %7 = tpu.matmul %3, %6, %cst_7 {dimension_numbers = #tpu.dot_dimension_numbers<[1], [0], [0], [1], [0, 0, 1, 1], [], []>} : vector<8x8xbf16>, vector<8x256xbf16>, vector<8x256xf32> -> vector<8x256xf32>
    %8 = arith.addf %5, %7 : vector<8x256xf32>
    %c0_8 = arith.constant 0 : index
    %c0_9 = arith.constant 0 : index
    %9 = vector.load %arg5[%c0_8, %c0_9] : memref<1x256xf32, #tpu.memory_space<vmem>>, vector<1x256xf32>
    %10 = vector.broadcast %9 : vector<1x256xf32> to vector<8x256xf32>
    %11 = arith.addf %8, %10 : vector<8x256xf32>
    %cst_10 = arith.constant 0.000000e+00 : f32
    %12 = vector.broadcast %cst_10 : f32 to vector<8x256xf32>
    %13 = arith.maximumf %11, %12 : vector<8x256xf32>
    %14 = arith.truncf %13 : vector<8x256xf32> to vector<8x256xbf16>
    %c0_11 = arith.constant 0 : index
    %c0_12 = arith.constant 0 : index
    %15 = vector.load %arg6[%c0_11, %c0_12] : memref<256x256xbf16, #tpu.memory_space<vmem>>, vector<256x256xbf16>
    %cst_13 = arith.constant dense<0.000000e+00> : vector<8x256xf32>
    %16 = tpu.matmul %14, %15, %cst_13 {dimension_numbers = #tpu.dot_dimension_numbers<[1], [0], [0], [1], [0, 0, 1, 1], [], []>} : vector<8x256xbf16>, vector<256x256xbf16>, vector<8x256xf32> -> vector<8x256xf32>
    %c0_14 = arith.constant 0 : index
    %c0_15 = arith.constant 0 : index
    %17 = vector.load %arg7[%c0_14, %c0_15] : memref<1x256xf32, #tpu.memory_space<vmem>>, vector<1x256xf32>
    %18 = vector.broadcast %17 : vector<1x256xf32> to vector<8x256xf32>
    %19 = arith.addf %16, %18 : vector<8x256xf32>
    %cst_16 = arith.constant 0.000000e+00 : f32
    %20 = vector.broadcast %cst_16 : f32 to vector<8x256xf32>
    %21 = arith.maximumf %19, %20 : vector<8x256xf32>
    %c0_17 = arith.constant 0 : index
    %c0_18 = arith.constant 0 : index
    %22 = vector.load %arg8[%c0_17, %c0_18] : memref<1x256xf32, #tpu.memory_space<vmem>>, vector<1x256xf32>
    %23 = vector.broadcast %22 : vector<1x256xf32> to vector<8x256xf32>
    %24 = arith.mulf %21, %23 : vector<8x256xf32>
    %cst_19 = arith.constant dense<0.000000e+00> : vector<8xf32>
    %25 = vector.multi_reduction <add>, %24, %cst_19 [1] : vector<8x256xf32> to vector<8xf32>
    %26 = vector.shape_cast %25 : vector<8xf32> to vector<8x1xf32>
    %c0_20 = arith.constant 0 : index
    %c0_21 = arith.constant 0 : index
    %27 = vector.load %arg9[%c0_20, %c0_21] : memref<1x1xf32, #tpu.memory_space<vmem>>, vector<1x1xf32>
    %28 = vector.broadcast %27 : vector<1x1xf32> to vector<8x1xf32>
    %29 = arith.addf %26, %28 : vector<8x1xf32>
    %c0_22 = arith.constant 0 : index
    %c0_23 = arith.constant 0 : index
    %30 = vector.load %arg10[%c0_22, %c0_23] : memref<8x1xf32, #tpu.memory_space<vmem>>, vector<8x1xf32>
    tpu.vector_store %arg10[%c0_22, %c0_23], %29 {strides = array<i32>} : memref<8x1xf32, #tpu.memory_space<vmem>>, vector<8x1xf32>,
    return
  }
  func.func @transform_0(%arg0: i32) -> (i32, i32) {
    %c0_i32 = arith.constant 0 : i32
    %c0_i32_0 = arith.constant 0 : i32
    return %arg0, %c0_i32 : i32, i32
  }
  func.func @transform_1(%arg0: i32) -> (i32, i32) {
    %c0_i32 = arith.constant 0 : i32
    %c0_i32_0 = arith.constant 0 : i32
    return %arg0, %c0_i32 : i32, i32
  }
  func.func @transform_2(%arg0: i32) -> (i32, i32) {
    %c0_i32 = arith.constant 0 : i32
    %c0_i32_0 = arith.constant 0 : i32
    %c0_i32_1 = arith.constant 0 : i32
    return %c0_i32, %c0_i32_0 : i32, i32
  }
  func.func @transform_3(%arg0: i32) -> (i32, i32) {
    %c0_i32 = arith.constant 0 : i32
    %c0_i32_0 = arith.constant 0 : i32
    %c0_i32_1 = arith.constant 0 : i32
    return %c0_i32, %c0_i32_0 : i32, i32
  }
  func.func @transform_4(%arg0: i32) -> (i32, i32) {
    %c0_i32 = arith.constant 0 : i32
    %c0_i32_0 = arith.constant 0 : i32
    %c0_i32_1 = arith.constant 0 : i32
    return %c0_i32, %c0_i32_0 : i32, i32
  }
  func.func @transform_5(%arg0: i32) -> (i32, i32) {
    %c0_i32 = arith.constant 0 : i32
    %c0_i32_0 = arith.constant 0 : i32
    %c0_i32_1 = arith.constant 0 : i32
    return %c0_i32, %c0_i32_0 : i32, i32
  }
  func.func @transform_6(%arg0: i32) -> (i32, i32) {
    %c0_i32 = arith.constant 0 : i32
    %c0_i32_0 = arith.constant 0 : i32
    %c0_i32_1 = arith.constant 0 : i32
    return %c0_i32, %c0_i32_0 : i32, i32
  }
  func.func @transform_7(%arg0: i32) -> (i32, i32) {
    %c0_i32 = arith.constant 0 : i32
    %c0_i32_0 = arith.constant 0 : i32
    %c0_i32_1 = arith.constant 0 : i32
    return %c0_i32, %c0_i32_0 : i32, i32
  }
  func.func @transform_8(%arg0: i32) -> (i32, i32) {
    %c0_i32 = arith.constant 0 : i32
    %c0_i32_0 = arith.constant 0 : i32
    %c0_i32_1 = arith.constant 0 : i32
    return %c0_i32, %c0_i32_0 : i32, i32
  }
  func.func @transform_9(%arg0: i32) -> (i32, i32) {
    %c0_i32 = arith.constant 0 : i32
    %c0_i32_0 = arith.constant 0 : i32
    return %arg0, %c0_i32 : i32, i32
  }
}

</mosaic_0001>

<llo_original>
// kernel: tpu_custom_call.1
$region0: #{tpu_custom_call.1}
  #allocation0 [shape = 'u32[]', space=smem, size = 0x4, offset = 0x4, fixed_abs, tag = 'smem constant byte address 0x4 - core index']
  #allocation1 [shape = 'u32[144,128]{1,0:T(1,128)}', space=vmem, size = 0x12000, scoped, tag = 'internal scratch']
  #allocation2 [shape = 'f32[1,1]{1,0:T(1,128)S(1)}', space=vmem, size = 0x200, scoped, tag = 'scoped memory for tpu_custom_call.1']
  %s0 = inlined_call_operand.hbm [shape: f32[2,1024], index: 0, kind: input, shape index: {}]
  %s1 = inlined_call_operand.vmem [shape: f32[2,8], index: 1, kind: input, shape index: {}]
  %s2 = inlined_call_operand.hbm [shape: bf16[1024,256], index: 2, kind: input, shape index: {}]
  %s3 = inlined_call_operand.hbm [shape: bf16[8,256], index: 3, kind: input, shape index: {}]
  %s4 = inlined_call_operand.vmem [shape: f32[1,256], index: 4, kind: input, shape index: {}]
  %s5 = inlined_call_operand.hbm [shape: bf16[256,256], index: 5, kind: input, shape index: {}]
  %s6 = inlined_call_operand.vmem [shape: f32[1,256], index: 6, kind: input, shape index: {}]
  %s7 = inlined_call_operand.vmem [shape: f32[1,256], index: 7, kind: input, shape index: {}]
  %s8 = inlined_call_operand.<no memory space> [shape: f32[1,1], index: 8, kind: input, shape index: {}]
  %s9 = inlined_call_operand.vmem [shape: f32[2,1], index: 9, kind: output, shape index: {}]
  %s10 = sld [smem:[#allocation0]]
  $region92: #{tpu_custom_call.1} parent=0
    _
  %s12 = ssub.s32 1, %s10
  %s13 = scalar_select 0, %s12, %s10
  %v14 = vstv %s8
  %15 = vst [vmem:[#allocation2] sm:$0x1] %v14
  $region1: #{tpu_custom_call.1} parent=0
    #allocation3 [shape = 'u8[32768]{0}', space=vmem, size = 0x8000, scoped, tag = 'input window, operand 0, single buffered']
    #allocation4 [shape = 's32[1]{0}', space=sflag, size = 0x4, scoped, tag = 'scoped memory for tpu_custom_call.1']
    #allocation5 [shape = 'u8[524288]{0}', space=vmem, size = 0x80000, scoped, tag = 'input window, operand 2, single buffered']
    #allocation6 [shape = 's32[1]{0}', space=sflag, size = 0x4, scoped, tag = 'scoped memory for tpu_custom_call.1']
    #allocation7 [shape = 'u8[4096]{0}', space=vmem, size = 0x1000, scoped, tag = 'input window, operand 3, single buffered']
    #allocation8 [shape = 'u8[131072]{0}', space=vmem, size = 0x20000, scoped, tag = 'input window, operand 5, single buffered']
    #allocation9 [shape = 's32[1]{0}', space=sflag, size = 0x4, scoped, tag = 'scoped memory for tpu_custom_call.1']
    #allocation10 [shape = 'u8[4096]{0}', space=vmem, size = 0x1000, scoped, tag = 'output window, operand 0, single buffered']
    %16 = vsyncpa [#allocation4], 0
    %17 = vsyncpa [#allocation6], 0
    %18 = vsyncpa [#allocation9], 0
    // Predicated region
    $region2: #{tpu_custom_call.1} parent=1 // pred_check
      _
    $region3: #{tpu_custom_call.1} parent=1 // pred_check_branch
      %20 = sbr.rel (0) target = $region5
    $region4: #{tpu_custom_call.1} parent=1 // pred_region
      %s22 = ssub.s32 1024, 256
      %23 = vsyncadd [#allocation4], %s22
      %s24 = sshll.u32 [#allocation3], 4
      %s25 = int_to_ptr.vmem [resolvable:$true] %s24
      %30 = dma.hbm_to_vmem [thread:$0]  %s0, 256, %s25, [#allocation4], 256, 256, 16
    $region5: #{tpu_custom_call.1} parent=1 // pred_fallthru
      _
    // Predicated region
    $region6: #{tpu_custom_call.1} parent=1 // pred_check
      _
    $region7: #{tpu_custom_call.1} parent=1 // pred_check_branch
      %32 = sbr.rel (0) target = $region9
    $region8: #{tpu_custom_call.1} parent=1 // pred_region
      _
    $region9: #{tpu_custom_call.1} parent=1 // pred_fallthru
      _
    // Predicated region
    $region10: #{tpu_custom_call.1} parent=1 // pred_check
      _
    $region11: #{tpu_custom_call.1} parent=1 // pred_check_branch
      %34 = sbr.rel (0) target = $region13
    $region12: #{tpu_custom_call.1} parent=1 // pred_region
      %s36 = ssub.s32 16384, 16384
      %37 = vsyncadd [#allocation6], %s36
      %s38 = sshll.u32 [#allocation5], 4
      %s39 = int_to_ptr.vmem [resolvable:$true] %s38
      %44 = dma.hbm_to_vmem [thread:$0]  %s2, 16384, %s39, [#allocation6], 128, 128, 8
    $region13: #{tpu_custom_call.1} parent=1 // pred_fallthru
      _
    // Predicated region
    $region14: #{tpu_custom_call.1} parent=1 // pred_check
      _
    $region15: #{tpu_custom_call.1} parent=1 // pred_check_branch
      %46 = sbr.rel (0) target = $region17
    $region16: #{tpu_custom_call.1} parent=1 // pred_region
      %s48 = ssub.s32 128, 128
      %49 = vsyncadd [#allocation6], %s48
      %s51 = sshll.u32 [#allocation7], 4
      %s52 = int_to_ptr.vmem [resolvable:$true] %s51
      %54 = dma.hbm_to_vmem [thread:$0]  %s3, 128, %s52, [#allocation6]
    $region17: #{tpu_custom_call.1} parent=1 // pred_fallthru
      _
    // Predicated region
    $region18: #{tpu_custom_call.1} parent=1 // pred_check
      _
    $region19: #{tpu_custom_call.1} parent=1 // pred_check_branch
      %56 = sbr.rel (0) target = $region21
    $region20: #{tpu_custom_call.1} parent=1 // pred_region
      _
    $region21: #{tpu_custom_call.1} parent=1 // pred_fallthru
      _
    // Predicated region
    $region22: #{tpu_custom_call.1} parent=1 // pred_check
      _
    $region23: #{tpu_custom_call.1} parent=1 // pred_check_branch
      %58 = sbr.rel (0) target = $region25
    $region24: #{tpu_custom_call.1} parent=1 // pred_region
      %s60 = ssub.s32 4096, 4096
      %61 = vsyncadd [#allocation9], %s60
      %s62 = sshll.u32 [#allocation8], 4
      %s63 = int_to_ptr.vmem [resolvable:$true] %s62
      %68 = dma.hbm_to_vmem [thread:$0]  %s5, 4096, %s63, [#allocation9], 128, 128, 8
    $region25: #{tpu_custom_call.1} parent=1 // pred_fallthru
      _
    // Predicated region
    $region26: #{tpu_custom_call.1} parent=1 // pred_check
      _
    $region27: #{tpu_custom_call.1} parent=1 // pred_check_branch
      %70 = sbr.rel (0) target = $region29
    $region28: #{tpu_custom_call.1} parent=1 // pred_region
      _
    $region29: #{tpu_custom_call.1} parent=1 // pred_fallthru
      _
    // Predicated region
    $region30: #{tpu_custom_call.1} parent=1 // pred_check
      _
    $region31: #{tpu_custom_call.1} parent=1 // pred_check_branch
      %72 = sbr.rel (0) target = $region33
    $region32: #{tpu_custom_call.1} parent=1 // pred_region
      _
    $region33: #{tpu_custom_call.1} parent=1 // pred_fallthru
      _
    // Predicated region
    $region34: #{tpu_custom_call.1} parent=1 // pred_check
      _
    $region35: #{tpu_custom_call.1} parent=1 // pred_check_branch
      %74 = sbr.rel (0) target = $region37
    $region36: #{tpu_custom_call.1} parent=1 // pred_region
      _
    $region37: #{tpu_custom_call.1} parent=1 // pred_fallthru
      _
    // Predicated region
    $region38: #{tpu_custom_call.1} parent=1 // pred_check
      _
    $region39: #{tpu_custom_call.1} parent=1 // pred_check_branch
      %76 = sbr.rel (0) target = $region41
    $region40: #{tpu_custom_call.1} parent=1 // pred_region
      %77 = dma.done [#allocation4], 1024
    $region41: #{tpu_custom_call.1} parent=1 // pred_fallthru
      _
    // Predicated region
    $region42: #{tpu_custom_call.1} parent=1 // pred_check
      _
    $region43: #{tpu_custom_call.1} parent=1 // pred_check_branch
      %79 = sbr.rel (0) target = $region45
    $region44: #{tpu_custom_call.1} parent=1 // pred_region
      %80 = dma.done [#allocation6], 16384
    $region45: #{tpu_custom_call.1} parent=1 // pred_fallthru
      _
    // Predicated region
    $region46: #{tpu_custom_call.1} parent=1 // pred_check
      _
    $region47: #{tpu_custom_call.1} parent=1 // pred_check_branch
      %82 = sbr.rel (0) target = $region49
    $region48: #{tpu_custom_call.1} parent=1 // pred_region
      %83 = dma.done [#allocation6], 128
    $region49: #{tpu_custom_call.1} parent=1 // pred_fallthru
      _
    // Predicated region
    $region50: #{tpu_custom_call.1} parent=1 // pred_check
      _
    $region51: #{tpu_custom_call.1} parent=1 // pred_check_branch
      %85 = sbr.rel (0) target = $region53
    $region52: #{tpu_custom_call.1} parent=1 // pred_region
      %86 = dma.done [#allocation9], 4096
    $region53: #{tpu_custom_call.1} parent=1 // pred_fallthru
      _
    %v88 = vld [vmem:[#allocation3] sm:$0xff]
    %v89 = vld [vmem:[#allocation3 + $0x8] sm:$0xff]
    %v90 = vld [vmem:[#allocation3 + $0x10] sm:$0xff]
    %v91 = vld [vmem:[#allocation3 + $0x18] sm:$0xff]
    %v92 = vld [vmem:[#allocation3 + $0x20] sm:$0xff]
    %v93 = vld [vmem:[#allocation3 + $0x28] sm:$0xff]
    %v94 = vld [vmem:[#allocation3 + $0x30] sm:$0xff]
    %v95 = vld [vmem:[#allocation3 + $0x38] sm:$0xff]
    %v104 = vcombine.low %v88, %v90
    %v105 = vcombine.high %v88, %v90
    %v106 = vcombine.low %v92, %v94
    %v107 = vcombine.high %v92, %v94
    %v109 = vunpack.c.l.s4 1983009808
    %v110 = vunpack.c.0.s8 %v109
    %v111 = vlaneseq
    %v112 = vshrl.u32 %v111, 7
    %v113 = vsub.s32 %v110, %v112
    %v114 = vrot.slane %v104, %v113
    %v116 = vunpack.c.l.s4 1983009808
    %v117 = vunpack.c.0.s8 %v116
    %v118 = vlaneseq
    %v119 = vshrl.u32 %v118, 7
    %v120 = vsub.s32 %v117, %v119
    %v121 = vrot.slane %v105, %v120
    %v123 = vunpack.c.l.s4 1983009808
    %v124 = vunpack.c.0.s8 %v123
    %v125 = vlaneseq
    %v126 = vshrl.u32 %v125, 7
    %v127 = vsub.s32 %v124, %v126
    %v128 = vrot.slane %v106, %v127
    %v130 = vunpack.c.l.s4 1983009808
    %v131 = vunpack.c.0.s8 %v130
    %v132 = vlaneseq
    %v133 = vshrl.u32 %v132, 7
    %v134 = vsub.s32 %v131, %v133
    %v135 = vrot.slane %v107, %v134
    %v136 = vcombine.low %v114, %v128
    %v137 = vcombine.high %v114, %v128
    %v138 = vcombine.low %v121, %v135
    %v139 = vcombine.high %v121, %v135
    %v140 = vcombine.low %v89, %v91
    %v141 = vcombine.high %v89, %v91
    %v142 = vcombine.low %v93, %v95
    %v143 = vcombine.high %v93, %v95
    %v145 = vunpack.c.l.s4 1983009808
    %v146 = vunpack.c.0.s8 %v145
    %v147 = vlaneseq
    %v148 = vshrl.u32 %v147, 7
    %v149 = vsub.s32 %v146, %v148
    %v150 = vrot.slane %v140, %v149
    %v152 = vunpack.c.l.s4 1983009808
    %v153 = vunpack.c.0.s8 %v152
    %v154 = vlaneseq
    %v155 = vshrl.u32 %v154, 7
    %v156 = vsub.s32 %v153, %v155
    %v157 = vrot.slane %v141, %v156
    %v159 = vunpack.c.l.s4 1983009808
    %v160 = vunpack.c.0.s8 %v159
    %v161 = vlaneseq
    %v162 = vshrl.u32 %v161, 7
    %v163 = vsub.s32 %v160, %v162
    %v164 = vrot.slane %v142, %v163
    %v166 = vunpack.c.l.s4 1983009808
    %v167 = vunpack.c.0.s8 %v166
    %v168 = vlaneseq
    %v169 = vshrl.u32 %v168, 7
    %v170 = vsub.s32 %v167, %v169
    %v171 = vrot.slane %v143, %v170
    %v172 = vcombine.low %v150, %v164
    %v173 = vcombine.high %v150, %v164
    %v174 = vcombine.low %v157, %v171
    %v175 = vcombine.high %v157, %v171
    %v184 = vpack.c.bf16 %v136, %v136
    %v185 = vpack.c.bf16 %v137, %v137
    %v186 = vpack.c.bf16 %v138, %v138
    %v187 = vpack.c.bf16 %v139, %v139
    %v188 = vpack.c.bf16 %v172, %v172
    %v189 = vpack.c.bf16 %v173, %v173
    %v190 = vpack.c.bf16 %v174, %v174
    %v191 = vpack.c.bf16 %v175, %v175
    %v192 = vld [vmem:[%s1] sm:$0xff]
    %v193 = vpack.c.bf16 %v192, %v192
    %v194 = vld [vmem:[#allocation5] sm:$0xff]
    %v195 = vld [vmem:[#allocation5 + $0x8] sm:$0xff]
    %v196 = vld [vmem:[#allocation5 + $0x10] sm:$0xff]
    %v197 = vld [vmem:[#allocation5 + $0x18] sm:$0xff]
    %v198 = vld [vmem:[#allocation5 + $0x20] sm:$0xff]
    %v199 = vld [vmem:[#allocation5 + $0x28] sm:$0xff]
    %v200 = vld [vmem:[#allocation5 + $0x30] sm:$0xff]
    %v201 = vld [vmem:[#allocation5 + $0x38] sm:$0xff]
    %v202 = vld [vmem:[#allocation5 + $0x40] sm:$0xff]
    %v203 = vld [vmem:[#allocation5 + $0x48] sm:$0xff]
    %v204 = vld [vmem:[#allocation5 + $0x50] sm:$0xff]
    %v205 = vld [vmem:[#allocation5 + $0x58] sm:$0xff]
    %v206 = vld [vmem:[#allocation5 + $0x60] sm:$0xff]
    %v207 = vld [vmem:[#allocation5 + $0x68] sm:$0xff]
    %v208 = vld [vmem:[#allocation5 + $0x70] sm:$0xff]
    %v209 = vld [vmem:[#allocation5 + $0x78] sm:$0xff]
    %v210 = vld [vmem:[#allocation5 + $0x80] sm:$0xff]
    %v211 = vld [vmem:[#allocation5 + $0x88] sm:$0xff]
    %v212 = vld [vmem:[#allocation5 + $0x90] sm:$0xff]
    %v213 = vld [vmem:[#allocation5 + $0x98] sm:$0xff]
    %v214 = vld [vmem:[#allocation5 + $0xa0] sm:$0xff]
    %v215 = vld [vmem:[#allocation5 + $0xa8] sm:$0xff]
    %v216 = vld [vmem:[#allocation5 + $0xb0] sm:$0xff]
    %v217 = vld [vmem:[#allocation5 + $0xb8] sm:$0xff]
    %v218 = vld [vmem:[#allocation5 + $0xc0] sm:$0xff]
    %v219 = vld [vmem:[#allocation5 + $0xc8] sm:$0xff]
    %v220 = vld [vmem:[#allocation5 + $0xd0] sm:$0xff]
    %v221 = vld [vmem:[#allocation5 + $0xd8] sm:$0xff]
    %v222 = vld [vmem:[#allocation5 + $0xe0] sm:$0xff]
    %v223 = vld [vmem:[#allocation5 + $0xe8] sm:$0xff]
    %v224 = vld [vmem:[#allocation5 + $0xf0] sm:$0xff]
    %v225 = vld [vmem:[#allocation5 + $0xf8] sm:$0xff]
    %v226 = vld [vmem:[#allocation5 + $0x100] sm:$0xff]
    %v227 = vld [vmem:[#allocation5 + $0x108] sm:$0xff]
    %v228 = vld [vmem:[#allocation5 + $0x110] sm:$0xff]
    %v229 = vld [vmem:[#allocation5 + $0x118] sm:$0xff]
    %v230 = vld [vmem:[#allocation5 + $0x120] sm:$0xff]
    %v231 = vld [vmem:[#allocation5 + $0x128] sm:$0xff]
    %v232 = vld [vmem:[#allocation5 + $0x130] sm:$0xff]
    %v233 = vld [vmem:[#allocation5 + $0x138] sm:$0xff]
    %v234 = vld [vmem:[#allocation5 + $0x140] sm:$0xff]
    %v235 = vld [vmem:[#allocation5 + $0x148] sm:$0xff]
    %v236 = vld [vmem:[#allocation5 + $0x150] sm:$0xff]
    %v237 = vld [vmem:[#allocation5 + $0x158] sm:$0xff]
    %v238 = vld [vmem:[#allocation5 + $0x160] sm:$0xff]
    %v239 = vld [vmem:[#allocation5 + $0x168] sm:$0xff]
    %v240 = vld [vmem:[#allocation5 + $0x170] sm:$0xff]
    %v241 = vld [vmem:[#allocation5 + $0x178] sm:$0xff]
    %v242 = vld [vmem:[#allocation5 + $0x180] sm:$0xff]
    %v243 = vld [vmem:[#allocation5 + $0x188] sm:$0xff]
    %v244 = vld [vmem:[#allocation5 + $0x190] sm:$0xff]
    %v245 = vld [vmem:[#allocation5 + $0x198] sm:$0xff]
    %v246 = vld [vmem:[#allocation5 + $0x1a0] sm:$0xff]
    %v247 = vld [vmem:[#allocation5 + $0x1a8] sm:$0xff]
    %v248 = vld [vmem:[#allocation5 + $0x1b0] sm:$0xff]
    %v249 = vld [vmem:[#allocation5 + $0x1b8] sm:$0xff]
    %v250 = vld [vmem:[#allocation5 + $0x1c0] sm:$0xff]
    %v251 = vld [vmem:[#allocation5 + $0x1c8] sm:$0xff]
    %v252 = vld [vmem:[#allocation5 + $0x1d0] sm:$0xff]
    %v253 = vld [vmem:[#allocation5 + $0x1d8] sm:$0xff]
    %v254 = vld [vmem:[#allocation5 + $0x1e0] sm:$0xff]
    %v255 = vld [vmem:[#allocation5 + $0x1e8] sm:$0xff]
    %v256 = vld [vmem:[#allocation5 + $0x1f0] sm:$0xff]
    %v257 = vld [vmem:[#allocation5 + $0x1f8] sm:$0xff]
    %v258 = vld [vmem:[#allocation5 + $0x200] sm:$0xff]
    %v259 = vld [vmem:[#allocation5 + $0x208] sm:$0xff]
    %v260 = vld [vmem:[#allocation5 + $0x210] sm:$0xff]
    %v261 = vld [vmem:[#allocation5 + $0x218] sm:$0xff]
    %v262 = vld [vmem:[#allocation5 + $0x220] sm:$0xff]
    %v263 = vld [vmem:[#allocation5 + $0x228] sm:$0xff]
    %v264 = vld [vmem:[#allocation5 + $0x230] sm:$0xff]
    %v265 = vld [vmem:[#allocation5 + $0x238] sm:$0xff]
    %v266 = vld [vmem:[#allocation5 + $0x240] sm:$0xff]
    %v267 = vld [vmem:[#allocation5 + $0x248] sm:$0xff]
    %v268 = vld [vmem:[#allocation5 + $0x250] sm:$0xff]
    %v269 = vld [vmem:[#allocation5 + $0x258] sm:$0xff]
    %v270 = vld [vmem:[#allocation5 + $0x260] sm:$0xff]
    %v271 = vld [vmem:[#allocation5 + $0x268] sm:$0xff]
    %v272 = vld [vmem:[#allocation5 + $0x270] sm:$0xff]
    %v273 = vld [vmem:[#allocation5 + $0x278] sm:$0xff]
    %v274 = vld [vmem:[#allocation5 + $0x280] sm:$0xff]
    %v275 = vld [vmem:[#allocation5 + $0x288] sm:$0xff]
    %v276 = vld [vmem:[#allocation5 + $0x290] sm:$0xff]
    %v277 = vld [vmem:[#allocation5 + $0x298] sm:$0xff]
    %v278 = vld [vmem:[#allocation5 + $0x2a0] sm:$0xff]
    %v279 = vld [vmem:[#allocation5 + $0x2a8] sm:$0xff]
    %v280 = vld [vmem:[#allocation5 + $0x2b0] sm:$0xff]
    %v281 = vld [vmem:[#allocation5 + $0x2b8] sm:$0xff]
    %v282 = vld [vmem:[#allocation5 + $0x2c0] sm:$0xff]
    %v283 = vld [vmem:[#allocation5 + $0x2c8] sm:$0xff]
    %v284 = vld [vmem:[#allocation5 + $0x2d0] sm:$0xff]
    %v285 = vld [vmem:[#allocation5 + $0x2d8] sm:$0xff]
    %v286 = vld [vmem:[#allocation5 + $0x2e0] sm:$0xff]
    %v287 = vld [vmem:[#allocation5 + $0x2e8] sm:$0xff]
    %v288 = vld [vmem:[#allocation5 + $0x2f0] sm:$0xff]
    %v289 = vld [vmem:[#allocation5 + $0x2f8] sm:$0xff]
    %v290 = vld [vmem:[#allocation5 + $0x300] sm:$0xff]
    %v291 = vld [vmem:[#allocation5 + $0x308] sm:$0xff]
    %v292 = vld [vmem:[#allocation5 + $0x310] sm:$0xff]
    %v293 = vld [vmem:[#allocation5 + $0x318] sm:$0xff]
    %v294 = vld [vmem:[#allocation5 + $0x320] sm:$0xff]
    %v295 = vld [vmem:[#allocation5 + $0x328] sm:$0xff]
    %v296 = vld [vmem:[#allocation5 + $0x330] sm:$0xff]
    %v297 = vld [vmem:[#allocation5 + $0x338] sm:$0xff]
    %v298 = vld [vmem:[#allocation5 + $0x340] sm:$0xff]
    %v299 = vld [vmem:[#allocation5 + $0x348] sm:$0xff]
    %v300 = vld [vmem:[#allocation5 + $0x350] sm:$0xff]
    %v301 = vld [vmem:[#allocation5 + $0x358] sm:$0xff]
    %v302 = vld [vmem:[#allocation5 + $0x360] sm:$0xff]
    %v303 = vld [vmem:[#allocation5 + $0x368] sm:$0xff]
    %v304 = vld [vmem:[#allocation5 + $0x370] sm:$0xff]
    %v305 = vld [vmem:[#allocation5 + $0x378] sm:$0xff]
    %v306 = vld [vmem:[#allocation5 + $0x380] sm:$0xff]
    %v307 = vld [vmem:[#allocation5 + $0x388] sm:$0xff]
    %v308 = vld [vmem:[#allocation5 + $0x390] sm:$0xff]
    %v309 = vld [vmem:[#allocation5 + $0x398] sm:$0xff]
    %v310 = vld [vmem:[#allocation5 + $0x3a0] sm:$0xff]
    %v311 = vld [vmem:[#allocation5 + $0x3a8] sm:$0xff]
    %v312 = vld [vmem:[#allocation5 + $0x3b0] sm:$0xff]
    %v313 = vld [vmem:[#allocation5 + $0x3b8] sm:$0xff]
    %v314 = vld [vmem:[#allocation5 + $0x3c0] sm:$0xff]
    %v315 = vld [vmem:[#allocation5 + $0x3c8] sm:$0xff]
    %v316 = vld [vmem:[#allocation5 + $0x3d0] sm:$0xff]
    %v317 = vld [vmem:[#allocation5 + $0x3d8] sm:$0xff]
    %v318 = vld [vmem:[#allocation5 + $0x3e0] sm:$0xff]
    %v319 = vld [vmem:[#allocation5 + $0x3e8] sm:$0xff]
    %v320 = vld [vmem:[#allocation5 + $0x3f0] sm:$0xff]
    %v321 = vld [vmem:[#allocation5 + $0x3f8] sm:$0xff]
    %v322 = vld [vmem:[#allocation7] sm:$0xff]
    %v324 = vunpack.c.l.b16 %v322
    %v325 = vunpack.c.h.b16 %v322
    %v326 = vpack.c.b16 %v324, %v324
    %v327 = vpack.c.b16 %v325, %v325
    %vm328 = vcmask 64512
    %v330 = vsel %vm328, %v193, 0
    %vm332 = vcmask 1043456
    %v334 = vsel %vm332, %v326, 0
    %v337 = vsel %vm332, %v327, 0
    %339 = vmatprep.subr.bf16.mxu0 0
    %340 = vmatpush1.bf16.msra.mxu0 0
    %341 = vmatprep.subr.bf16.mxu0 0
    %342 = vmatpush1.bf16.msra.mxu0 0
    %343 = vmatprep.subr.bf16.mxu0 0
    %344 = vmatpush1.bf16.msra.mxu0 0
    %345 = vmatprep.subr.bf16.mxu0 0
    %346 = vmatpush1.bf16.msra.mxu0 0
    %347 = vmatprep.subr.bf16.mxu0 0
    %348 = vmatpush1.bf16.msra.mxu0 0
    %349 = vmatprep.subr.bf16.mxu0 0
    %350 = vmatpush1.bf16.msra.mxu0 0
    %351 = vmatprep.subr.bf16.mxu0 0
    %352 = vmatpush1.bf16.msra.mxu0 0
    %353 = vmatprep.subr.bf16.mxu0 %v337
    %354 = vmatpush1.bf16.msra.mxu0 %v334
    %355 = vmatprep.subr.bf16.mxu0 0
    %356 = vmatpush2.bf16.msra.mxu0 0
    %357 = vmatprep.subr.bf16.mxu0 0
    %358 = vmatpush2.bf16.msra.mxu0 0
    %359 = vmatprep.subr.bf16.mxu0 0
    %360 = vmatpush2.bf16.msra.mxu0 0
    %361 = vmatprep.subr.bf16.mxu0 0
    %362 = vmatpush2.bf16.msra.mxu0 0
    %363 = vmatprep.subr.bf16.mxu0 0
    %364 = vmatpush2.bf16.msra.mxu0 0
    %365 = vmatprep.subr.bf16.mxu0 0
    %366 = vmatpush2.bf16.msra.mxu0 0
    %367 = vmatprep.subr.bf16.mxu0 0
    %368 = vmatpush2.bf16.msra.mxu0 0
    %369 = vmatprep.subr.bf16.mxu0 0
    %370 = vmatpush2.bf16.msra.mxu0 0
    %371 = vmatprep.mubr.bf16.mxu0 0
    %372 = vmatmul.mubr.bf16.gmra.mxu0 %v330
    %v373 = vpop.f32.mrf.mxu0
    %v374 = vadd.f32 0.0, %v373
    %v375 = vpop.f32.mrf.mxu0
    %v376 = vadd.f32 0.0, %v375
    %v377 = vpop.f32.mrf.mxu0
    %v378 = vpop.f32.mrf.mxu0
    %379 = vdwg.mxu0
    %v508 = vunpack.c.l.b16 %v194
    %v509 = vunpack.c.h.b16 %v194
    %v510 = vunpack.c.l.b16 %v195
    %v511 = vunpack.c.h.b16 %v195
    %v512 = vunpack.c.l.b16 %v196
    %v513 = vunpack.c.h.b16 %v196
    %v514 = vunpack.c.l.b16 %v197
    %v515 = vunpack.c.h.b16 %v197
    %v516 = vunpack.c.l.b16 %v198
    %v517 = vunpack.c.h.b16 %v198
    %v518 = vunpack.c.l.b16 %v199
    %v519 = vunpack.c.h.b16 %v199
    %v520 = vunpack.c.l.b16 %v200
    %v521 = vunpack.c.h.b16 %v200
    %v522 = vunpack.c.l.b16 %v201
    %v523 = vunpack.c.h.b16 %v201
    %v524 = vunpack.c.l.b16 %v202
    %v525 = vunpack.c.h.b16 %v202
    %v526 = vunpack.c.l.b16 %v203
    %v527 = vunpack.c.h.b16 %v203
    %v528 = vunpack.c.l.b16 %v204
    %v529 = vunpack.c.h.b16 %v204
    %v530 = vunpack.c.l.b16 %v205
    %v531 = vunpack.c.h.b16 %v205
    %v532 = vunpack.c.l.b16 %v206
    %v533 = vunpack.c.h.b16 %v206
    %v534 = vunpack.c.l.b16 %v207
    %v535 = vunpack.c.h.b16 %v207
    %v536 = vunpack.c.l.b16 %v208
    %v537 = vunpack.c.h.b16 %v208
    %v538 = vunpack.c.l.b16 %v209
    %v539 = vunpack.c.h.b16 %v209
    %v540 = vunpack.c.l.b16 %v210
    %v541 = vunpack.c.h.b16 %v210
    %v542 = vunpack.c.l.b16 %v211
    %v543 = vunpack.c.h.b16 %v211
    %v544 = vunpack.c.l.b16 %v212
    %v545 = vunpack.c.h.b16 %v212
    %v546 = vunpack.c.l.b16 %v213
    %v547 = vunpack.c.h.b16 %v213
    %v548 = vunpack.c.l.b16 %v214
    %v549 = vunpack.c.h.b16 %v214
    %v550 = vunpack.c.l.b16 %v215
    %v551 = vunpack.c.h.b16 %v215
    %v552 = vunpack.c.l.b16 %v216
    %v553 = vunpack.c.h.b16 %v216
    %v554 = vunpack.c.l.b16 %v217
    %v555 = vunpack.c.h.b16 %v217
    %v556 = vunpack.c.l.b16 %v218
    %v557 = vunpack.c.h.b16 %v218
    %v558 = vunpack.c.l.b16 %v219
    %v559 = vunpack.c.h.b16 %v219
    %v560 = vunpack.c.l.b16 %v220
    %v561 = vunpack.c.h.b16 %v220
    %v562 = vunpack.c.l.b16 %v221
    %v563 = vunpack.c.h.b16 %v221
    %v564 = vunpack.c.l.b16 %v222
    %v565 = vunpack.c.h.b16 %v222
    %v566 = vunpack.c.l.b16 %v223
    %v567 = vunpack.c.h.b16 %v223
    %v568 = vunpack.c.l.b16 %v224
    %v569 = vunpack.c.h.b16 %v224
    %v570 = vunpack.c.l.b16 %v225
    %v571 = vunpack.c.h.b16 %v225
    %v572 = vunpack.c.l.b16 %v226
    %v573 = vunpack.c.h.b16 %v226
    %v574 = vunpack.c.l.b16 %v227
    %v575 = vunpack.c.h.b16 %v227
    %v576 = vunpack.c.l.b16 %v228
    %v577 = vunpack.c.h.b16 %v228
    %v578 = vunpack.c.l.b16 %v229
    %v579 = vunpack.c.h.b16 %v229
    %v580 = vunpack.c.l.b16 %v230
    %v581 = vunpack.c.h.b16 %v230
    %v582 = vunpack.c.l.b16 %v231
    %v583 = vunpack.c.h.b16 %v231
    %v584 = vunpack.c.l.b16 %v232
    %v585 = vunpack.c.h.b16 %v232
    %v586 = vunpack.c.l.b16 %v233
    %v587 = vunpack.c.h.b16 %v233
    %v588 = vunpack.c.l.b16 %v234
    %v589 = vunpack.c.h.b16 %v234
    %v590 = vunpack.c.l.b16 %v235
    %v591 = vunpack.c.h.b16 %v235
    %v592 = vunpack.c.l.b16 %v236
    %v593 = vunpack.c.h.b16 %v236
    %v594 = vunpack.c.l.b16 %v237
    %v595 = vunpack.c.h.b16 %v237
    %v596 = vunpack.c.l.b16 %v238
    %v597 = vunpack.c.h.b16 %v238
    %v598 = vunpack.c.l.b16 %v239
    %v599 = vunpack.c.h.b16 %v239
    %v600 = vunpack.c.l.b16 %v240
    %v601 = vunpack.c.h.b16 %v240
    %v602 = vunpack.c.l.b16 %v241
    %v603 = vunpack.c.h.b16 %v241
    %v604 = vunpack.c.l.b16 %v242
    %v605 = vunpack.c.h.b16 %v242
    %v606 = vunpack.c.l.b16 %v243
    %v607 = vunpack.c.h.b16 %v243
    %v608 = vunpack.c.l.b16 %v244
    %v609 = vunpack.c.h.b16 %v244
    %v610 = vunpack.c.l.b16 %v245
    %v611 = vunpack.c.h.b16 %v245
    %v612 = vunpack.c.l.b16 %v246
    %v613 = vunpack.c.h.b16 %v246
    %v614 = vunpack.c.l.b16 %v247
    %v615 = vunpack.c.h.b16 %v247
    %v616 = vunpack.c.l.b16 %v248
    %v617 = vunpack.c.h.b16 %v248
    %v618 = vunpack.c.l.b16 %v249
    %v619 = vunpack.c.h.b16 %v249
    %v620 = vunpack.c.l.b16 %v250
    %v621 = vunpack.c.h.b16 %v250
    %v622 = vunpack.c.l.b16 %v251
    %v623 = vunpack.c.h.b16 %v251
    %v624 = vunpack.c.l.b16 %v252
    %v625 = vunpack.c.h.b16 %v252
    %v626 = vunpack.c.l.b16 %v253
    %v627 = vunpack.c.h.b16 %v253
    %v628 = vunpack.c.l.b16 %v254
    %v629 = vunpack.c.h.b16 %v254
    %v630 = vunpack.c.l.b16 %v255
    %v631 = vunpack.c.h.b16 %v255
    %v632 = vunpack.c.l.b16 %v256
    %v633 = vunpack.c.h.b16 %v256
    %v634 = vunpack.c.l.b16 %v257
    %v635 = vunpack.c.h.b16 %v257
    %v636 = vunpack.c.l.b16 %v258
    %v637 = vunpack.c.h.b16 %v258
    %v638 = vunpack.c.l.b16 %v259
    %v639 = vunpack.c.h.b16 %v259
    %v640 = vunpack.c.l.b16 %v260
    %v641 = vunpack.c.h.b16 %v260
    %v642 = vunpack.c.l.b16 %v261
    %v643 = vunpack.c.h.b16 %v261
    %v644 = vunpack.c.l.b16 %v262
    %v645 = vunpack.c.h.b16 %v262
    %v646 = vunpack.c.l.b16 %v263
    %v647 = vunpack.c.h.b16 %v263
    %v648 = vunpack.c.l.b16 %v264
    %v649 = vunpack.c.h.b16 %v264
    %v650 = vunpack.c.l.b16 %v265
    %v651 = vunpack.c.h.b16 %v265
    %v652 = vunpack.c.l.b16 %v266
    %v653 = vunpack.c.h.b16 %v266
    %v654 = vunpack.c.l.b16 %v267
    %v655 = vunpack.c.h.b16 %v267
    %v656 = vunpack.c.l.b16 %v268
    %v657 = vunpack.c.h.b16 %v268
    %v658 = vunpack.c.l.b16 %v269
    %v659 = vunpack.c.h.b16 %v269
    %v660 = vunpack.c.l.b16 %v270
    %v661 = vunpack.c.h.b16 %v270
    %v662 = vunpack.c.l.b16 %v271
    %v663 = vunpack.c.h.b16 %v271
    %v664 = vunpack.c.l.b16 %v272
    %v665 = vunpack.c.h.b16 %v272
    %v666 = vunpack.c.l.b16 %v273
    %v667 = vunpack.c.h.b16 %v273
    %v668 = vunpack.c.l.b16 %v274
    %v669 = vunpack.c.h.b16 %v274
    %v670 = vunpack.c.l.b16 %v275
    %v671 = vunpack.c.h.b16 %v275
    %v672 = vunpack.c.l.b16 %v276
    %v673 = vunpack.c.h.b16 %v276
    %v674 = vunpack.c.l.b16 %v277
    %v675 = vunpack.c.h.b16 %v277
    %v676 = vunpack.c.l.b16 %v278
    %v677 = vunpack.c.h.b16 %v278
    %v678 = vunpack.c.l.b16 %v279
    %v679 = vunpack.c.h.b16 %v279
    %v680 = vunpack.c.l.b16 %v280
    %v681 = vunpack.c.h.b16 %v280
    %v682 = vunpack.c.l.b16 %v281
    %v683 = vunpack.c.h.b16 %v281
    %v684 = vunpack.c.l.b16 %v282
    %v685 = vunpack.c.h.b16 %v282
    %v686 = vunpack.c.l.b16 %v283
    %v687 = vunpack.c.h.b16 %v283
    %v688 = vunpack.c.l.b16 %v284
    %v689 = vunpack.c.h.b16 %v284
    %v690 = vunpack.c.l.b16 %v285
    %v691 = vunpack.c.h.b16 %v285
    %v692 = vunpack.c.l.b16 %v286
    %v693 = vunpack.c.h.b16 %v286
    %v694 = vunpack.c.l.b16 %v287
    %v695 = vunpack.c.h.b16 %v287
    %v696 = vunpack.c.l.b16 %v288
    %v697 = vunpack.c.h.b16 %v288
    %v698 = vunpack.c.l.b16 %v289
    %v699 = vunpack.c.h.b16 %v289
    %v700 = vunpack.c.l.b16 %v290
    %v701 = vunpack.c.h.b16 %v290
    %v702 = vunpack.c.l.b16 %v291
    %v703 = vunpack.c.h.b16 %v291
    %v704 = vunpack.c.l.b16 %v292
    %v705 = vunpack.c.h.b16 %v292
    %v706 = vunpack.c.l.b16 %v293
    %v707 = vunpack.c.h.b16 %v293
    %v708 = vunpack.c.l.b16 %v294
    %v709 = vunpack.c.h.b16 %v294
    %v710 = vunpack.c.l.b16 %v295
    %v711 = vunpack.c.h.b16 %v295
    %v712 = vunpack.c.l.b16 %v296
    %v713 = vunpack.c.h.b16 %v296
    %v714 = vunpack.c.l.b16 %v297
    %v715 = vunpack.c.h.b16 %v297
    %v716 = vunpack.c.l.b16 %v298
    %v717 = vunpack.c.h.b16 %v298
    %v718 = vunpack.c.l.b16 %v299
    %v719 = vunpack.c.h.b16 %v299
    %v720 = vunpack.c.l.b16 %v300
    %v721 = vunpack.c.h.b16 %v300
    %v722 = vunpack.c.l.b16 %v301
    %v723 = vunpack.c.h.b16 %v301
    %v724 = vunpack.c.l.b16 %v302
    %v725 = vunpack.c.h.b16 %v302
    %v726 = vunpack.c.l.b16 %v303
    %v727 = vunpack.c.h.b16 %v303
    %v728 = vunpack.c.l.b16 %v304
    %v729 = vunpack.c.h.b16 %v304
    %v730 = vunpack.c.l.b16 %v305
    %v731 = vunpack.c.h.b16 %v305
    %v732 = vunpack.c.l.b16 %v306
    %v733 = vunpack.c.h.b16 %v306
    %v734 = vunpack.c.l.b16 %v307
    %v735 = vunpack.c.h.b16 %v307
    %v736 = vunpack.c.l.b16 %v308
    %v737 = vunpack.c.h.b16 %v308
    %v738 = vunpack.c.l.b16 %v309
    %v739 = vunpack.c.h.b16 %v309
    %v740 = vunpack.c.l.b16 %v310
    %v741 = vunpack.c.h.b16 %v310
    %v742 = vunpack.c.l.b16 %v311
    %v743 = vunpack.c.h.b16 %v311
    %v744 = vunpack.c.l.b16 %v312
    %v745 = vunpack.c.h.b16 %v312
    %v746 = vunpack.c.l.b16 %v313
    %v747 = vunpack.c.h.b16 %v313
    %v748 = vunpack.c.l.b16 %v314
    %v749 = vunpack.c.h.b16 %v314
    %v750 = vunpack.c.l.b16 %v315
    %v751 = vunpack.c.h.b16 %v315
    %v752 = vunpack.c.l.b16 %v316
    %v753 = vunpack.c.h.b16 %v316
    %v754 = vunpack.c.l.b16 %v317
    %v755 = vunpack.c.h.b16 %v317
    %v756 = vunpack.c.l.b16 %v318
    %v757 = vunpack.c.h.b16 %v318
    %v758 = vunpack.c.l.b16 %v319
    %v759 = vunpack.c.h.b16 %v319
    %v760 = vunpack.c.l.b16 %v320
    %v761 = vunpack.c.h.b16 %v320
    %v762 = vunpack.c.l.b16 %v321
    %v763 = vunpack.c.h.b16 %v321
    %v764 = vpack.c.b16 %v510, %v508
    %v765 = vpack.c.b16 %v511, %v509
    %v766 = vpack.c.b16 %v514, %v512
    %v767 = vpack.c.b16 %v515, %v513
    %v768 = vpack.c.b16 %v518, %v516
    %v769 = vpack.c.b16 %v519, %v517
    %v770 = vpack.c.b16 %v522, %v520
    %v771 = vpack.c.b16 %v523, %v521
    %v772 = vpack.c.b16 %v526, %v524
    %v773 = vpack.c.b16 %v527, %v525
    %v774 = vpack.c.b16 %v530, %v528
    %v775 = vpack.c.b16 %v531, %v529
    %v776 = vpack.c.b16 %v534, %v532
    %v777 = vpack.c.b16 %v535, %v533
    %v778 = vpack.c.b16 %v538, %v536
    %v779 = vpack.c.b16 %v539, %v537
    %v780 = vpack.c.b16 %v542, %v540
    %v781 = vpack.c.b16 %v543, %v541
    %v782 = vpack.c.b16 %v546, %v544
    %v783 = vpack.c.b16 %v547, %v545
    %v784 = vpack.c.b16 %v550, %v548
    %v785 = vpack.c.b16 %v551, %v549
    %v786 = vpack.c.b16 %v554, %v552
    %v787 = vpack.c.b16 %v555, %v553
    %v788 = vpack.c.b16 %v558, %v556
    %v789 = vpack.c.b16 %v559, %v557
    %v790 = vpack.c.b16 %v562, %v560
    %v791 = vpack.c.b16 %v563, %v561
    %v792 = vpack.c.b16 %v566, %v564
    %v793 = vpack.c.b16 %v567, %v565
    %v794 = vpack.c.b16 %v570, %v568
    %v795 = vpack.c.b16 %v571, %v569
    %v796 = vpack.c.b16 %v574, %v572
    %v797 = vpack.c.b16 %v575, %v573
    %v798 = vpack.c.b16 %v578, %v576
    %v799 = vpack.c.b16 %v579, %v577
    %v800 = vpack.c.b16 %v582, %v580
    %v801 = vpack.c.b16 %v583, %v581
    %v802 = vpack.c.b16 %v586, %v584
    %v803 = vpack.c.b16 %v587, %v585
    %v804 = vpack.c.b16 %v590, %v588
    %v805 = vpack.c.b16 %v591, %v589
    %v806 = vpack.c.b16 %v594, %v592
    %v807 = vpack.c.b16 %v595, %v593
    %v808 = vpack.c.b16 %v598, %v596
    %v809 = vpack.c.b16 %v599, %v597
    %v810 = vpack.c.b16 %v602, %v600
    %v811 = vpack.c.b16 %v603, %v601
    %v812 = vpack.c.b16 %v606, %v604
    %v813 = vpack.c.b16 %v607, %v605
    %v814 = vpack.c.b16 %v610, %v608
    %v815 = vpack.c.b16 %v611, %v609
    %v816 = vpack.c.b16 %v614, %v612
    %v817 = vpack.c.b16 %v615, %v613
    %v818 = vpack.c.b16 %v618, %v616
    %v819 = vpack.c.b16 %v619, %v617
    %v820 = vpack.c.b16 %v622, %v620
    %v821 = vpack.c.b16 %v623, %v621
    %v822 = vpack.c.b16 %v626, %v624
    %v823 = vpack.c.b16 %v627, %v625
    %v824 = vpack.c.b16 %v630, %v628
    %v825 = vpack.c.b16 %v631, %v629
    %v826 = vpack.c.b16 %v634, %v632
    %v827 = vpack.c.b16 %v635, %v633
    %v828 = vpack.c.b16 %v638, %v636
    %v829 = vpack.c.b16 %v639, %v637
    %v830 = vpack.c.b16 %v642, %v640
    %v831 = vpack.c.b16 %v643, %v641
    %v832 = vpack.c.b16 %v646, %v644
    %v833 = vpack.c.b16 %v647, %v645
    %v834 = vpack.c.b16 %v650, %v648
    %v835 = vpack.c.b16 %v651, %v649
    %v836 = vpack.c.b16 %v654, %v652
    %v837 = vpack.c.b16 %v655, %v653
    %v838 = vpack.c.b16 %v658, %v656
    %v839 = vpack.c.b16 %v659, %v657
    %v840 = vpack.c.b16 %v662, %v660
    %v841 = vpack.c.b16 %v663, %v661
    %v842 = vpack.c.b16 %v666, %v664
    %v843 = vpack.c.b16 %v667, %v665
    %v844 = vpack.c.b16 %v670, %v668
    %v845 = vpack.c.b16 %v671, %v669
    %v846 = vpack.c.b16 %v674, %v672
    %v847 = vpack.c.b16 %v675, %v673
    %v848 = vpack.c.b16 %v678, %v676
    %v849 = vpack.c.b16 %v679, %v677
    %v850 = vpack.c.b16 %v682, %v680
    %v851 = vpack.c.b16 %v683, %v681
    %v852 = vpack.c.b16 %v686, %v684
    %v853 = vpack.c.b16 %v687, %v685
    %v854 = vpack.c.b16 %v690, %v688
    %v855 = vpack.c.b16 %v691, %v689
    %v856 = vpack.c.b16 %v694, %v692
    %v857 = vpack.c.b16 %v695, %v693
    %v858 = vpack.c.b16 %v698, %v696
    %v859 = vpack.c.b16 %v699, %v697
    %v860 = vpack.c.b16 %v702, %v700
    %v861 = vpack.c.b16 %v703, %v701
    %v862 = vpack.c.b16 %v706, %v704
    %v863 = vpack.c.b16 %v707, %v705
    %v864 = vpack.c.b16 %v710, %v708
    %v865 = vpack.c.b16 %v711, %v709
    %v866 = vpack.c.b16 %v714, %v712
    %v867 = vpack.c.b16 %v715, %v713
    %v868 = vpack.c.b16 %v718, %v716
    %v869 = vpack.c.b16 %v719, %v717
    %v870 = vpack.c.b16 %v722, %v720
    %v871 = vpack.c.b16 %v723, %v721
    %v872 = vpack.c.b16 %v726, %v724
    %v873 = vpack.c.b16 %v727, %v725
    %v874 = vpack.c.b16 %v730, %v728
    %v875 = vpack.c.b16 %v731, %v729
    %v876 = vpack.c.b16 %v734, %v732
    %v877 = vpack.c.b16 %v735, %v733
    %v878 = vpack.c.b16 %v738, %v736
    %v879 = vpack.c.b16 %v739, %v737
    %v880 = vpack.c.b16 %v742, %v740
    %v881 = vpack.c.b16 %v743, %v741
    %v882 = vpack.c.b16 %v746, %v744
    %v883 = vpack.c.b16 %v747, %v745
    %v884 = vpack.c.b16 %v750, %v748
    %v885 = vpack.c.b16 %v751, %v749
    %v886 = vpack.c.b16 %v754, %v752
    %v887 = vpack.c.b16 %v755, %v753
    %v888 = vpack.c.b16 %v758, %v756
    %v889 = vpack.c.b16 %v759, %v757
    %v890 = vpack.c.b16 %v762, %v760
    %v891 = vpack.c.b16 %v763, %v761
    %1020 = vmatprep.subr.bf16.mxu0 %v779
    %1021 = vmatpush1.bf16.msra.mxu0 %v778
    %1022 = vmatprep.subr.bf16.mxu0 %v777
    %1023 = vmatpush1.bf16.msra.mxu0 %v776
    %1024 = vmatprep.subr.bf16.mxu0 %v775
    %1025 = vmatpush1.bf16.msra.mxu0 %v774
    %1026 = vmatprep.subr.bf16.mxu0 %v773
    %1027 = vmatpush1.bf16.msra.mxu0 %v772
    %1028 = vmatprep.subr.bf16.mxu0 %v771
    %1029 = vmatpush1.bf16.msra.mxu0 %v770
    %1030 = vmatprep.subr.bf16.mxu0 %v769
    %1031 = vmatpush1.bf16.msra.mxu0 %v768
    %1032 = vmatprep.subr.bf16.mxu0 %v767
    %1033 = vmatpush1.bf16.msra.mxu0 %v766
    %1034 = vmatprep.subr.bf16.mxu0 %v765
    %1035 = vmatpush1.bf16.msra.mxu0 %v764
    %1036 = vmatprep.subr.bf16.mxu0 %v795
    %1037 = vmatpush2.bf16.msra.mxu0 %v794
    %1038 = vmatprep.subr.bf16.mxu0 %v793
    %1039 = vmatpush2.bf16.msra.mxu0 %v792
    %1040 = vmatprep.subr.bf16.mxu0 %v791
    %1041 = vmatpush2.bf16.msra.mxu0 %v790
    %1042 = vmatprep.subr.bf16.mxu0 %v789
    %1043 = vmatpush2.bf16.msra.mxu0 %v788
    %1044 = vmatprep.subr.bf16.mxu0 %v787
    %1045 = vmatpush2.bf16.msra.mxu0 %v786
    %1046 = vmatprep.subr.bf16.mxu0 %v785
    %1047 = vmatpush2.bf16.msra.mxu0 %v784
    %1048 = vmatprep.subr.bf16.mxu0 %v783
    %1049 = vmatpush2.bf16.msra.mxu0 %v782
    %1050 = vmatprep.subr.bf16.mxu0 %v781
    %1051 = vmatpush2.bf16.msra.mxu0 %v780
    %1052 = vmatprep.mubr.bf16.mxu0 %v185
    %1053 = vmatmul.mubr.bf16.gmra.mxu0 %v184
    %v1054 = vpop.f32.mrf.mxu0
    %v1055 = vadd.f32 %v374, %v1054
    %v1056 = vpop.f32.mrf.mxu0
    %v1057 = vadd.f32 %v376, %v1056
    %v1058 = vpop.f32.mrf.mxu0
    %v1059 = vpop.f32.mrf.mxu0
    %1060 = vdwg.mxu0
    %1061 = vmatprep.subr.bf16.mxu0 %v811
    %1062 = vmatpush1.bf16.msra.mxu0 %v810
    %1063 = vmatprep.subr.bf16.mxu0 %v809
    %1064 = vmatpush1.bf16.msra.mxu0 %v808
    %1065 = vmatprep.subr.bf16.mxu0 %v807
    %1066 = vmatpush1.bf16.msra.mxu0 %v806
    %1067 = vmatprep.subr.bf16.mxu0 %v805
    %1068 = vmatpush1.bf16.msra.mxu0 %v804
    %1069 = vmatprep.subr.bf16.mxu0 %v803
    %1070 = vmatpush1.bf16.msra.mxu0 %v802
    %1071 = vmatprep.subr.bf16.mxu0 %v801
    %1072 = vmatpush1.bf16.msra.mxu0 %v800
    %1073 = vmatprep.subr.bf16.mxu0 %v799
    %1074 = vmatpush1.bf16.msra.mxu0 %v798
    %1075 = vmatprep.subr.bf16.mxu0 %v797
    %1076 = vmatpush1.bf16.msra.mxu0 %v796
    %1077 = vmatprep.subr.bf16.mxu0 %v827
    %1078 = vmatpush2.bf16.msra.mxu0 %v826
    %1079 = vmatprep.subr.bf16.mxu0 %v825
    %1080 = vmatpush2.bf16.msra.mxu0 %v824
    %1081 = vmatprep.subr.bf16.mxu0 %v823
    %1082 = vmatpush2.bf16.msra.mxu0 %v822
    %1083 = vmatprep.subr.bf16.mxu0 %v821
    %1084 = vmatpush2.bf16.msra.mxu0 %v820
    %1085 = vmatprep.subr.bf16.mxu0 %v819
    %1086 = vmatpush2.bf16.msra.mxu0 %v818
    %1087 = vmatprep.subr.bf16.mxu0 %v817
    %1088 = vmatpush2.bf16.msra.mxu0 %v816
    %1089 = vmatprep.subr.bf16.mxu0 %v815
    %1090 = vmatpush2.bf16.msra.mxu0 %v814
    %1091 = vmatprep.subr.bf16.mxu0 %v813
    %1092 = vmatpush2.bf16.msra.mxu0 %v812
    %1093 = vmatprep.mubr.bf16.mxu0 %v187
    %1094 = vmatmul.mubr.bf16.gmra.mxu0 %v186
    %v1095 = vpop.f32.mrf.mxu0
    %v1096 = vadd.f32 %v1055, %v1095
    %v1097 = vpop.f32.mrf.mxu0
    %v1098 = vadd.f32 %v1057, %v1097
    %v1099 = vpop.f32.mrf.mxu0
    %v1100 = vpop.f32.mrf.mxu0
    %1101 = vdwg.mxu0
    %1102 = vmatprep.subr.bf16.mxu0 %v843
    %1103 = vmatpush1.bf16.msra.mxu0 %v842
    %1104 = vmatprep.subr.bf16.mxu0 %v841
    %1105 = vmatpush1.bf16.msra.mxu0 %v840
    %1106 = vmatprep.subr.bf16.mxu0 %v839
    %1107 = vmatpush1.bf16.msra.mxu0 %v838
    %1108 = vmatprep.subr.bf16.mxu0 %v837
    %1109 = vmatpush1.bf16.msra.mxu0 %v836
    %1110 = vmatprep.subr.bf16.mxu0 %v835
    %1111 = vmatpush1.bf16.msra.mxu0 %v834
    %1112 = vmatprep.subr.bf16.mxu0 %v833
    %1113 = vmatpush1.bf16.msra.mxu0 %v832
    %1114 = vmatprep.subr.bf16.mxu0 %v831
    %1115 = vmatpush1.bf16.msra.mxu0 %v830
    %1116 = vmatprep.subr.bf16.mxu0 %v829
    %1117 = vmatpush1.bf16.msra.mxu0 %v828
    %1118 = vmatprep.subr.bf16.mxu0 %v859
    %1119 = vmatpush2.bf16.msra.mxu0 %v858
    %1120 = vmatprep.subr.bf16.mxu0 %v857
    %1121 = vmatpush2.bf16.msra.mxu0 %v856
    %1122 = vmatprep.subr.bf16.mxu0 %v855
    %1123 = vmatpush2.bf16.msra.mxu0 %v854
    %1124 = vmatprep.subr.bf16.mxu0 %v853
    %1125 = vmatpush2.bf16.msra.mxu0 %v852
    %1126 = vmatprep.subr.bf16.mxu0 %v851
    %1127 = vmatpush2.bf16.msra.mxu0 %v850
    %1128 = vmatprep.subr.bf16.mxu0 %v849
    %1129 = vmatpush2.bf16.msra.mxu0 %v848
    %1130 = vmatprep.subr.bf16.mxu0 %v847
    %1131 = vmatpush2.bf16.msra.mxu0 %v846
    %1132 = vmatprep.subr.bf16.mxu0 %v845
    %1133 = vmatpush2.bf16.msra.mxu0 %v844
    %1134 = vmatprep.mubr.bf16.mxu0 %v189
    %1135 = vmatmul.mubr.bf16.gmra.mxu0 %v188
    %v1136 = vpop.f32.mrf.mxu0
    %v1137 = vadd.f32 %v1096, %v1136
    %v1138 = vpop.f32.mrf.mxu0
    %v1139 = vadd.f32 %v1098, %v1138
    %v1140 = vpop.f32.mrf.mxu0
    %v1141 = vpop.f32.mrf.mxu0
    %1142 = vdwg.mxu0
    %1143 = vmatprep.subr.bf16.mxu0 %v875
    %1144 = vmatpush1.bf16.msra.mxu0 %v874
    %1145 = vmatprep.subr.bf16.mxu0 %v873
    %1146 = vmatpush1.bf16.msra.mxu0 %v872
    %1147 = vmatprep.subr.bf16.mxu0 %v871
    %1148 = vmatpush1.bf16.msra.mxu0 %v870
    %1149 = vmatprep.subr.bf16.mxu0 %v869
    %1150 = vmatpush1.bf16.msra.mxu0 %v868
    %1151 = vmatprep.subr.bf16.mxu0 %v867
    %1152 = vmatpush1.bf16.msra.mxu0 %v866
    %1153 = vmatprep.subr.bf16.mxu0 %v865
    %1154 = vmatpush1.bf16.msra.mxu0 %v864
    %1155 = vmatprep.subr.bf16.mxu0 %v863
    %1156 = vmatpush1.bf16.msra.mxu0 %v862
    %1157 = vmatprep.subr.bf16.mxu0 %v861
    %1158 = vmatpush1.bf16.msra.mxu0 %v860
    %1159 = vmatprep.subr.bf16.mxu0 %v891
    %1160 = vmatpush2.bf16.msra.mxu0 %v890
    %1161 = vmatprep.subr.bf16.mxu0 %v889
    %1162 = vmatpush2.bf16.msra.mxu0 %v888
    %1163 = vmatprep.subr.bf16.mxu0 %v887
    %1164 = vmatpush2.bf16.msra.mxu0 %v886
    %1165 = vmatprep.subr.bf16.mxu0 %v885
    %1166 = vmatpush2.bf16.msra.mxu0 %v884
    %1167 = vmatprep.subr.bf16.mxu0 %v883
    %1168 = vmatpush2.bf16.msra.mxu0 %v882
    %1169 = vmatprep.subr.bf16.mxu0 %v881
    %1170 = vmatpush2.bf16.msra.mxu0 %v880
    %1171 = vmatprep.subr.bf16.mxu0 %v879
    %1172 = vmatpush2.bf16.msra.mxu0 %v878
    %1173 = vmatprep.subr.bf16.mxu0 %v877
    %1174 = vmatpush2.bf16.msra.mxu0 %v876
    %1175 = vmatprep.mubr.bf16.mxu0 %v191
    %1176 = vmatmul.mubr.bf16.gmra.mxu0 %v190
    %v1177 = vpop.f32.mrf.mxu0
    %v1178 = vadd.f32 %v1137, %v1177
    %v1179 = vpop.f32.mrf.mxu0
    %v1180 = vadd.f32 %v1139, %v1179
    %v1181 = vpop.f32.mrf.mxu0
    %v1182 = vpop.f32.mrf.mxu0
    %1183 = vdwg.mxu0
    %v1184 = vld [vmem:[%s4] sm:$0x3]
    %v1186 = vlaneseq
    %v1187 = vshrl.u32 %v1186, 7
    %v1188 = vsub.s32 0, %v1187
    %v1189 = vrot.slane %v1184, %v1188
    %v1190 = vlaneseq
    %v1191 = vshrl.u32 %v1190, 7
    %v1192 = vsub.s32 1, %v1191
    %v1193 = vrot.slane %v1184, %v1192
    %v1196 = vadd.f32 %v1178, %v1189
    %v1197 = vadd.f32 %v1180, %v1193
    %v1198 = vmax.f32 %v1196, 0.0
    %v1199 = vmax.f32 %v1197, 0.0
    %v1200 = vpack.c.bf16 %v1198, %v1198
    %v1201 = vpack.c.bf16 %v1199, %v1199
    %v1202 = vld [vmem:[#allocation8] sm:$0xff]
    %v1203 = vld [vmem:[#allocation8 + $0x8] sm:$0xff]
    %v1204 = vld [vmem:[#allocation8 + $0x10] sm:$0xff]
    %v1205 = vld [vmem:[#allocation8 + $0x18] sm:$0xff]
    %v1206 = vld [vmem:[#allocation8 + $0x20] sm:$0xff]
    %v1207 = vld [vmem:[#allocation8 + $0x28] sm:$0xff]
    %v1208 = vld [vmem:[#allocation8 + $0x30] sm:$0xff]
    %v1209 = vld [vmem:[#allocation8 + $0x38] sm:$0xff]
    %v1210 = vld [vmem:[#allocation8 + $0x40] sm:$0xff]
    %v1211 = vld [vmem:[#allocation8 + $0x48] sm:$0xff]
    %v1212 = vld [vmem:[#allocation8 + $0x50] sm:$0xff]
    %v1213 = vld [vmem:[#allocation8 + $0x58] sm:$0xff]
    %v1214 = vld [vmem:[#allocation8 + $0x60] sm:$0xff]
    %v1215 = vld [vmem:[#allocation8 + $0x68] sm:$0xff]
    %v1216 = vld [vmem:[#allocation8 + $0x70] sm:$0xff]
    %v1217 = vld [vmem:[#allocation8 + $0x78] sm:$0xff]
    %v1218 = vld [vmem:[#allocation8 + $0x80] sm:$0xff]
    %v1219 = vld [vmem:[#allocation8 + $0x88] sm:$0xff]
    %v1220 = vld [vmem:[#allocation8 + $0x90] sm:$0xff]
    %v1221 = vld [vmem:[#allocation8 + $0x98] sm:$0xff]
    %v1222 = vld [vmem:[#allocation8 + $0xa0] sm:$0xff]
    %v1223 = vld [vmem:[#allocation8 + $0xa8] sm:$0xff]
    %v1224 = vld [vmem:[#allocation8 + $0xb0] sm:$0xff]
    %v1225 = vld [vmem:[#allocation8 + $0xb8] sm:$0xff]
    %v1226 = vld [vmem:[#allocation8 + $0xc0] sm:$0xff]
    %v1227 = vld [vmem:[#allocation8 + $0xc8] sm:$0xff]
    %v1228 = vld [vmem:[#allocation8 + $0xd0] sm:$0xff]
    %v1229 = vld [vmem:[#allocation8 + $0xd8] sm:$0xff]
    %v1230 = vld [vmem:[#allocation8 + $0xe0] sm:$0xff]
    %v1231 = vld [vmem:[#allocation8 + $0xe8] sm:$0xff]
    %v1232 = vld [vmem:[#allocation8 + $0xf0] sm:$0xff]
    %v1233 = vld [vmem:[#allocation8 + $0xf8] sm:$0xff]
    %v1234 = vld [vmem:[%s6] sm:$0x3]
    %v1236 = vlaneseq
    %v1237 = vshrl.u32 %v1236, 7
    %v1238 = vsub.s32 0, %v1237
    %v1239 = vrot.slane %v1234, %v1238
    %v1240 = vlaneseq
    %v1241 = vshrl.u32 %v1240, 7
    %v1242 = vsub.s32 1, %v1241
    %v1243 = vrot.slane %v1234, %v1242
    %v1278 = vunpack.c.l.b16 %v1202
    %v1279 = vunpack.c.h.b16 %v1202
    %v1280 = vunpack.c.l.b16 %v1203
    %v1281 = vunpack.c.h.b16 %v1203
    %v1282 = vunpack.c.l.b16 %v1204
    %v1283 = vunpack.c.h.b16 %v1204
    %v1284 = vunpack.c.l.b16 %v1205
    %v1285 = vunpack.c.h.b16 %v1205
    %v1286 = vunpack.c.l.b16 %v1206
    %v1287 = vunpack.c.h.b16 %v1206
    %v1288 = vunpack.c.l.b16 %v1207
    %v1289 = vunpack.c.h.b16 %v1207
    %v1290 = vunpack.c.l.b16 %v1208
    %v1291 = vunpack.c.h.b16 %v1208
    %v1292 = vunpack.c.l.b16 %v1209
    %v1293 = vunpack.c.h.b16 %v1209
    %v1294 = vunpack.c.l.b16 %v1210
    %v1295 = vunpack.c.h.b16 %v1210
    %v1296 = vunpack.c.l.b16 %v1211
    %v1297 = vunpack.c.h.b16 %v1211
    %v1298 = vunpack.c.l.b16 %v1212
    %v1299 = vunpack.c.h.b16 %v1212
    %v1300 = vunpack.c.l.b16 %v1213
    %v1301 = vunpack.c.h.b16 %v1213
    %v1302 = vunpack.c.l.b16 %v1214
    %v1303 = vunpack.c.h.b16 %v1214
    %v1304 = vunpack.c.l.b16 %v1215
    %v1305 = vunpack.c.h.b16 %v1215
    %v1306 = vunpack.c.l.b16 %v1216
    %v1307 = vunpack.c.h.b16 %v1216
    %v1308 = vunpack.c.l.b16 %v1217
    %v1309 = vunpack.c.h.b16 %v1217
    %v1310 = vunpack.c.l.b16 %v1218
    %v1311 = vunpack.c.h.b16 %v1218
    %v1312 = vunpack.c.l.b16 %v1219
    %v1313 = vunpack.c.h.b16 %v1219
    %v1314 = vunpack.c.l.b16 %v1220
    %v1315 = vunpack.c.h.b16 %v1220
    %v1316 = vunpack.c.l.b16 %v1221
    %v1317 = vunpack.c.h.b16 %v1221
    %v1318 = vunpack.c.l.b16 %v1222
    %v1319 = vunpack.c.h.b16 %v1222
    %v1320 = vunpack.c.l.b16 %v1223
    %v1321 = vunpack.c.h.b16 %v1223
    %v1322 = vunpack.c.l.b16 %v1224
    %v1323 = vunpack.c.h.b16 %v1224
    %v1324 = vunpack.c.l.b16 %v1225
    %v1325 = vunpack.c.h.b16 %v1225
    %v1326 = vunpack.c.l.b16 %v1226
    %v1327 = vunpack.c.h.b16 %v1226
    %v1328 = vunpack.c.l.b16 %v1227
    %v1329 = vunpack.c.h.b16 %v1227
    %v1330 = vunpack.c.l.b16 %v1228
    %v1331 = vunpack.c.h.b16 %v1228
    %v1332 = vunpack.c.l.b16 %v1229
    %v1333 = vunpack.c.h.b16 %v1229
    %v1334 = vunpack.c.l.b16 %v1230
    %v1335 = vunpack.c.h.b16 %v1230
    %v1336 = vunpack.c.l.b16 %v1231
    %v1337 = vunpack.c.h.b16 %v1231
    %v1338 = vunpack.c.l.b16 %v1232
    %v1339 = vunpack.c.h.b16 %v1232
    %v1340 = vunpack.c.l.b16 %v1233
    %v1341 = vunpack.c.h.b16 %v1233
    %v1342 = vpack.c.b16 %v1280, %v1278
    %v1343 = vpack.c.b16 %v1281, %v1279
    %v1344 = vpack.c.b16 %v1284, %v1282
    %v1345 = vpack.c.b16 %v1285, %v1283
    %v1346 = vpack.c.b16 %v1288, %v1286
    %v1347 = vpack.c.b16 %v1289, %v1287
    %v1348 = vpack.c.b16 %v1292, %v1290
    %v1349 = vpack.c.b16 %v1293, %v1291
    %v1350 = vpack.c.b16 %v1296, %v1294
    %v1351 = vpack.c.b16 %v1297, %v1295
    %v1352 = vpack.c.b16 %v1300, %v1298
    %v1353 = vpack.c.b16 %v1301, %v1299
    %v1354 = vpack.c.b16 %v1304, %v1302
    %v1355 = vpack.c.b16 %v1305, %v1303
    %v1356 = vpack.c.b16 %v1308, %v1306
    %v1357 = vpack.c.b16 %v1309, %v1307
    %v1358 = vpack.c.b16 %v1312, %v1310
    %v1359 = vpack.c.b16 %v1313, %v1311
    %v1360 = vpack.c.b16 %v1316, %v1314
    %v1361 = vpack.c.b16 %v1317, %v1315
    %v1362 = vpack.c.b16 %v1320, %v1318
    %v1363 = vpack.c.b16 %v1321, %v1319
    %v1364 = vpack.c.b16 %v1324, %v1322
    %v1365 = vpack.c.b16 %v1325, %v1323
    %v1366 = vpack.c.b16 %v1328, %v1326
    %v1367 = vpack.c.b16 %v1329, %v1327
    %v1368 = vpack.c.b16 %v1332, %v1330
    %v1369 = vpack.c.b16 %v1333, %v1331
    %v1370 = vpack.c.b16 %v1336, %v1334
    %v1371 = vpack.c.b16 %v1337, %v1335
    %v1372 = vpack.c.b16 %v1340, %v1338
    %v1373 = vpack.c.b16 %v1341, %v1339
    %1406 = vmatprep.subr.bf16.mxu0 %v1357
    %1407 = vmatpush1.bf16.msra.mxu0 %v1356
    %1408 = vmatprep.subr.bf16.mxu0 %v1355
    %1409 = vmatpush1.bf16.msra.mxu0 %v1354
    %1410 = vmatprep.subr.bf16.mxu0 %v1353
    %1411 = vmatpush1.bf16.msra.mxu0 %v1352
    %1412 = vmatprep.subr.bf16.mxu0 %v1351
    %1413 = vmatpush1.bf16.msra.mxu0 %v1350
    %1414 = vmatprep.subr.bf16.mxu0 %v1349
    %1415 = vmatpush1.bf16.msra.mxu0 %v1348
    %1416 = vmatprep.subr.bf16.mxu0 %v1347
    %1417 = vmatpush1.bf16.msra.mxu0 %v1346
    %1418 = vmatprep.subr.bf16.mxu0 %v1345
    %1419 = vmatpush1.bf16.msra.mxu0 %v1344
    %1420 = vmatprep.subr.bf16.mxu0 %v1343
    %1421 = vmatpush1.bf16.msra.mxu0 %v1342
    %1422 = vmatprep.subr.bf16.mxu0 %v1373
    %1423 = vmatpush2.bf16.msra.mxu0 %v1372
    %1424 = vmatprep.subr.bf16.mxu0 %v1371
    %1425 = vmatpush2.bf16.msra.mxu0 %v1370
    %1426 = vmatprep.subr.bf16.mxu0 %v1369
    %1427 = vmatpush2.bf16.msra.mxu0 %v1368
    %1428 = vmatprep.subr.bf16.mxu0 %v1367
    %1429 = vmatpush2.bf16.msra.mxu0 %v1366
    %1430 = vmatprep.subr.bf16.mxu0 %v1365
    %1431 = vmatpush2.bf16.msra.mxu0 %v1364
    %1432 = vmatprep.subr.bf16.mxu0 %v1363
    %1433 = vmatpush2.bf16.msra.mxu0 %v1362
    %1434 = vmatprep.subr.bf16.mxu0 %v1361
    %1435 = vmatpush2.bf16.msra.mxu0 %v1360
    %1436 = vmatprep.subr.bf16.mxu0 %v1359
    %1437 = vmatpush2.bf16.msra.mxu0 %v1358
    %1438 = vmatprep.mubr.bf16.mxu0 %v1201
    %1439 = vmatmul.mubr.bf16.gmra.mxu0 %v1200
    %v1440 = vpop.f32.mrf.mxu0
    %v1441 = vadd.f32 %v1239, %v1440
    %v1442 = vpop.f32.mrf.mxu0
    %v1443 = vadd.f32 %v1243, %v1442
    %v1444 = vpop.f32.mrf.mxu0
    %v1445 = vpop.f32.mrf.mxu0
    %1446 = vdwg.mxu0
    %v1447 = vmax.f32 %v1441, 0.0
    %v1448 = vmax.f32 %v1443, 0.0
    %v1449 = vld [vmem:[%s7] sm:$0x3]
    %v1451 = vlaneseq
    %v1452 = vshrl.u32 %v1451, 7
    %v1453 = vsub.s32 0, %v1452
    %v1454 = vrot.slane %v1449, %v1453
    %v1455 = vlaneseq
    %v1456 = vshrl.u32 %v1455, 7
    %v1457 = vsub.s32 1, %v1456
    %v1458 = vrot.slane %v1449, %v1457
    %v1461 = vmul.f32 %v1447, %v1454
    %v1462 = vmul.f32 %v1448, %v1458
    %v1463 = vadd.f32 %v1461, %v1462
    %1464 = vadd.xlane.f32.xlu0 %v1463
    %v1465 = vpop.xlane.xlu0 %1464
    %v1466 = vld [vmem:[#allocation2] sm:$0x1]
    %v1468 = vlaneseq
    %v1469 = vshrl.u32 %v1468, 7
    %v1470 = vsub.s32 0, %v1469
    %v1471 = vrot.slane %v1466, %v1470
    %v1473 = vadd.f32 %v1465, %v1471
    %vm1474 = vcmask 7168
    %1475 = vst.msk [vmem:[#allocation10] sm:$0xff] %vm1474, %v1473
    // Predicated region
    $region54: #{tpu_custom_call.1} parent=1 // pred_check
      _
    $region55: #{tpu_custom_call.1} parent=1 // pred_check_branch
      %1477 = sbr.rel (0) target = $region57
    $region56: #{tpu_custom_call.1} parent=1 // pred_region
      // Predicated region
      $region58: #{tpu_custom_call.1} parent=56 // pred_check
        _
      $region59: #{tpu_custom_call.1} parent=56 // pred_check_branch
        %1479 = sbr.rel (0) target = $region61
      $region60: #{tpu_custom_call.1} parent=56 // pred_region
        // Predicated region
        $region62: #{tpu_custom_call.1} parent=60 // pred_check
          _
        $region63: #{tpu_custom_call.1} parent=60 // pred_check_branch
          %1481 = sbr.rel target = $region65
        $region64: #{tpu_custom_call.1} parent=60 // pred_region
          // Predicated region
          $region77: #{tpu_custom_call.1} parent=64 // pred_check
            _
          $region78: #{tpu_custom_call.1} parent=64 // pred_check_branch
            %1497 = sbr.rel (0) target = $region80
          $region79: #{tpu_custom_call.1} parent=64 // pred_region
            %s1499 = ssub.s32 4, 1
            loop: start=0, step=1, limit=1
            $region81: #{tpu_custom_call.1} parent=79 // loop_pre_header
              _
            $region82: #{tpu_custom_call.1} parent=79 // loop_header
              %s1501 = sphi 0, %s1505
              %p1502 = scmp.ge.s32.totalorder %s1501, 1
              %s1506 = sphi [#allocation10], [#allocation10]
              %s1507 = sphi %s9, %s9
            $region83: #{tpu_custom_call.1} parent=79 // loop_header_branch
              %1504 = sbr.rel (%p1502) target = $region87
            $region84: #{tpu_custom_call.1} parent=79 // loop_body
              %v1508 = vld [vmem:[%s1506] sm:%s1499]
              %1509 = vst [vmem:[%s1507] sm:%s1499] %v1508
            $region85: #{tpu_custom_call.1} parent=79 // loop_footer
              %s1505 = sadd.s32 1, %s1501
            $region86: #{tpu_custom_call.1} parent=79 // loop_footer_branch
              %1500 = sbr.rel target = $region82
            $region87: #{tpu_custom_call.1} parent=79 // loop_exit
              _
          $region80: #{tpu_custom_call.1} parent=64 // pred_fallthru
            _
        $region65: #{tpu_custom_call.1} parent=60 // pred_fallthru
          _
        // Predicated region
        $region66: #{tpu_custom_call.1} parent=60 // pred_check
          _
        $region67: #{tpu_custom_call.1} parent=60 // pred_check_branch
          %1483 = sbr.rel (0) target = $region69
        $region68: #{tpu_custom_call.1} parent=60 // pred_region
          %s1485 = ssub.s32 4, 1
          loop: start=0, step=1, limit=1
          $region70: #{tpu_custom_call.1} parent=68 // loop_pre_header
            _
          $region71: #{tpu_custom_call.1} parent=68 // loop_header
            %s1487 = sphi 0, %s1491
            %p1488 = scmp.ge.s32.totalorder %s1487, 1
            %s1492 = sphi [#allocation10], [#allocation10]
            %s1493 = sphi %s9, %s9
          $region72: #{tpu_custom_call.1} parent=68 // loop_header_branch
            %1490 = sbr.rel (%p1488) target = $region76
          $region73: #{tpu_custom_call.1} parent=68 // loop_body
            %v1494 = vld [vmem:[%s1492] sm:%s1485]
            %1495 = vst [vmem:[%s1493] sm:%s1485] %v1494
          $region74: #{tpu_custom_call.1} parent=68 // loop_footer
            %s1491 = sadd.s32 1, %s1487
          $region75: #{tpu_custom_call.1} parent=68 // loop_footer_branch
            %1486 = sbr.rel target = $region71
          $region76: #{tpu_custom_call.1} parent=68 // loop_exit
            _
        $region69: #{tpu_custom_call.1} parent=60 // pred_fallthru
          _
      $region61: #{tpu_custom_call.1} parent=56 // pred_fallthru
        _
      %1510 = vnop
    $region57: #{tpu_custom_call.1} parent=1 // pred_fallthru
      _
    // Predicated region
    $region88: #{tpu_custom_call.1} parent=1 // pred_check
      _
    $region89: #{tpu_custom_call.1} parent=1 // pred_check_branch
      %1512 = sbr.rel (0) target = $region91
    $region90: #{tpu_custom_call.1} parent=1 // pred_region
      _
    $region91: #{tpu_custom_call.1} parent=1 // pred_fallthru
      _
    %1513 = vsyncpa [#allocation4], 1
    %1514 = vsyncpa [#allocation6], 1
    %1515 = vsyncpa [#allocation9], 1

</llo_original>
